<compile_context>
chip_gen: v5e
topology: v5e:2x2
jax: 0.10.0
libtpu: 0.0.40
codegen_flags: <defaults>
</compile_context>

<pallas_src>
import functools
import math

import jax
import jax.numpy as jnp
from jax.experimental import pallas as pl
from jax.experimental.pallas import tpu as pltpu

EPS = 1e-5  # nn.LayerNorm default


# ----------------------------------------------------------------------------
# Kernels
# ----------------------------------------------------------------------------
def _layernorm_f32(x_ref, g_ref, b_ref, out_dtype):
    """Numerically stable two-pass LayerNorm over the last dim (f32 stats)."""
    x = x_ref[...].astype(jnp.float32)
    mean = jnp.mean(x, axis=-1, keepdims=True)
    centered = x - mean
    var = jnp.mean(centered * centered, axis=-1, keepdims=True)
    y = (centered * jax.lax.rsqrt(var + EPS)) * g_ref[...].astype(jnp.float32)
    y = y + b_ref[...].astype(jnp.float32)
    return y.astype(out_dtype)


def _project(y, w_ref, bias_ref, o_ref):
    out = jnp.dot(y, w_ref[...], preferred_element_type=jnp.float32)
    out = out + bias_ref[...].astype(jnp.float32)
    o_ref[...] = out.astype(o_ref.dtype)


def _prenorm_resident_kernel(x_ref, g_ref, b_ref, w_ref, bias_ref, o_ref):
    # Whole (D, H) weight resident in VMEM (constant index_map -> single HBM
    # fetch for the entire kernel).  One grid axis over row tiles.
    # NOTE: a partial final row tile contains uninitialized pad rows; LayerNorm
    # stats are per-row, so valid rows are unaffected and the pad rows
    # (possibly NaN/Inf) are dropped by Pallas on writeback.
    y = _layernorm_f32(x_ref, g_ref, b_ref, w_ref.dtype)
    _project(y, w_ref, bias_ref, o_ref)


def _prenorm_streamed_kernel(x_ref, g_ref, b_ref, w_ref, bias_ref, o_ref, y_ref):
    # Streamed-W variant: grid = (row tiles, H tiles).  LayerNorm is computed
    # once per row tile (j == 0); the fresh y feeds the first matmul directly
    # and is cached in VMEM (compute dtype) for the remaining H tiles.
    j = pl.program_id(1)

    @pl.when(j == 0)
    def _():
        y = _layernorm_f32(x_ref, g_ref, b_ref, y_ref.dtype)
        y_ref[...] = y                       # cache for j > 0
        _project(y, w_ref, bias_ref, o_ref)  # no store->load dependency

    @pl.when(j != 0)
    def _():
        _project(y_ref[...], w_ref, bias_ref, o_ref)


# ----------------------------------------------------------------------------
# Tile / VMEM-budget selection
# ----------------------------------------------------------------------------
def _round_up(x, m):
    return ((x + m - 1) // m) * m


def _vmem_caps_bytes():
    """(physical per-core VMEM, usable budget) in bytes."""
    try:
        cap = int(pltpu.get_tpu_info().vmem_capacity_bytes)
    except Exception:
        cap = 64 * 2**20  # conservative fallback: v7x per-TensorCore VMEM
    # Leave headroom for Mosaic internal scratch / semaphores: budget ~80%
    # (~102 MiB on v5e/v6e's 128 MiB, ~51 MiB on v7x's 64 MiB).
    return cap, int(cap * 0.80)


def _working_set_bytes(tile_n, tile_h, D, H, x_isz, c_isz, resident):
    ws = 2 * tile_n * D * x_isz          # x tile (double-buffered)
    ws += 2 * tile_n * tile_h * x_isz    # out tile (double-buffered)
    ws += 2 * D * tile_h * c_isz         # W tile (double-buffered even if resident)
    if not resident:
        ws += tile_n * D * c_isz         # cached normalized-y VMEM scratch
    ws += 4 * (2 * D + H) * 4            # gamma / beta / bias (generous)
    return ws


def _select_tiles(N, D, H, x_isz, c_isz, budget):
    """Pick (tile_n, tile_h).  tile_h == H selects the resident-W kernel."""
    # Preferred row tile: as large as possible (arithmetic intensity w.r.t. a
    # streamed W is ~tile_n FLOP/byte), but for small/medium N split into >= 2
    # row tiles so both v7x TensorCores get work on the "parallel" axis.
    if N <= 256:
        tn_pref = N
    else:
        tn_pref = min(1024, max(128, _round_up(pl.cdiv(N, 2), 8)))

    cand_tn = [tn_pref] + [t for t in (512, 256, 128, 64, 32, 16, 8) if t < tn_pref]

    # Phase 1: whole W resident in VMEM (fetched from HBM exactly once).
    for tn in cand_tn:
        if _working_set_bytes(tn, H, D, H, x_isz, c_isz, resident=True) <= budget:
            return tn, H

    # Phase 2: stream W over H tiles; shrink tile_h before tile_n (frees VMEM
    # with zero extra HBM traffic, keeps arithmetic intensity ~tile_n).
    cand_tn2 = [t for t in (min(N, 1024), 512, 256, 128, 64, 32, 16, 8) if t <= N]
    cand_th = [t for t in (512, 256, 128) if t <= H]
    for tn in dict.fromkeys(cand_tn2):
        for th in cand_th:
            if _working_set_bytes(tn, th, D, H, x_isz, c_isz, resident=False) <= budget:
                return tn, th

    # Fallback: smallest reasonable tiles even if the estimate is over budget.
    return (min(N, 128) if N >= 128 else N), (min(H, 128) if H >= 128 else H)


# ----------------------------------------------------------------------------
# Wrapper
# ----------------------------------------------------------------------------
@functools.partial(jax.jit, static_argnames=("tile_n", "tile_h", "compute_dtype"))
def prenorm_linear(x, gamma, beta, w, bias, *, tile_n=None, tile_h=None,
                   compute_dtype=None):
    """output = Linear(LayerNorm(x)); x: (..., D) -> (..., H)."""
    *lead, D = x.shape
    H = w.shape[1]
    N = int(math.prod(lead)) if lead else 1
    x2 = x.reshape(N, D)

    # Compute dtype for the matmul operands (opt-in bf16 fast path for f32
    # inputs; the accumulator is always f32).  W is cast here, outside the
    # kernel, so the narrow dtype is what streams from HBM.
    cdtype = jnp.dtype(compute_dtype) if compute_dtype is not None else jnp.dtype(x.dtype)
    wmat = w.astype(cdtype)

    x_isz = jnp.dtype(x.dtype).itemsize
    c_isz = cdtype.itemsize

    cap, budget = _vmem_caps_bytes()
    auto_tn, auto_th = _select_tiles(N, D, H, x_isz, c_isz, budget)
    if tile_n is None:
        tile_n = auto_tn
    if tile_h is None:
        tile_h = auto_th
    tile_n = min(tile_n, N)
    tile_h = min(tile_h, H)

    resident = tile_h == H
    grid_n = pl.cdiv(N, tile_n)
    grid_h = pl.cdiv(H, tile_h)

    ws = _working_set_bytes(tile_n, tile_h, D, H, x_isz, c_isz, resident)
    # Ask the compiler for the working set plus headroom, never the full
    # physical VMEM (~57 MiB ceiling on v7x, ~115 MiB on v5e/v6e).
    vmem_limit = int(min(int(cap * 0.90), max(ws + ws // 2, 32 * 2**20)))

    gamma2 = gamma.reshape(1, D)
    beta2 = beta.reshape(1, D)
    bias2 = bias.reshape(1, H)

    # NOTE: for production shapes pad H (and D) to multiples of 128 so output
    # stores stay lane-dense; the tiny demo H uses a (legal) full-extent block.
    # TODO(synk): add a K(=D)-tiled variant with an f32 VMEM accumulator for
    # very large D (>= 8192), where the (D, tile_h) weight tile alone exceeds
    # the per-core VMEM budget.

    if resident:
        out2 = pl.pallas_call(
            _prenorm_resident_kernel,
            out_shape=jax.ShapeDtypeStruct((N, H), x.dtype),
            grid_spec=pltpu.PrefetchScalarGridSpec(
                num_scalar_prefetch=0,
                grid=(grid_n,),
                in_specs=[
                    pl.BlockSpec((tile_n, D), lambda i: (i, 0)),   # x rows
                    pl.BlockSpec((1, D), lambda i: (0, 0)),        # gamma
                    pl.BlockSpec((1, D), lambda i: (0, 0)),        # beta
                    pl.BlockSpec((D, H), lambda i: (0, 0)),        # W (resident)
                    pl.BlockSpec((1, H), lambda i: (0, 0)),        # bias
                ],
                out_specs=pl.BlockSpec((tile_n, H), lambda i: (i, 0)),
            ),
            compiler_params=pltpu.CompilerParams(
                dimension_semantics=("parallel",),
                vmem_limit_bytes=vmem_limit,
            ),
        )(x2, gamma2, beta2, wmat, bias2)
    else:
        out2 = pl.pallas_call(
            _prenorm_streamed_kernel,
            out_shape=jax.ShapeDtypeStruct((N, H), x.dtype),
            grid_spec=pltpu.PrefetchScalarGridSpec(
                num_scalar_prefetch=0,
                grid=(grid_n, grid_h),
                in_specs=[
                    pl.BlockSpec((tile_n, D), lambda i, j: (i, 0)),   # x rows
                    pl.BlockSpec((1, D), lambda i, j: (0, 0)),        # gamma
                    pl.BlockSpec((1, D), lambda i, j: (0, 0)),        # beta
                    # If profiling shows exposed DMA on v5e, consider
                    # pipeline_mode=pl.Buffered(3) on this spec.
                    pl.BlockSpec((D, tile_h), lambda i, j: (0, j)),   # W tile
                    pl.BlockSpec((1, tile_h), lambda i, j: (0, j)),   # bias
                ],
                out_specs=pl.BlockSpec((tile_n, tile_h), lambda i, j: (i, j)),
                scratch_shapes=[pltpu.VMEM((tile_n, D), cdtype)],     # cached y
            ),
            compiler_params=pltpu.CompilerParams(
                # Row axis independent -> "parallel" (megacore); H axis must be
                # sequential so the cached y is valid for j > 0.
                dimension_semantics=("parallel", "arbitrary"),
                vmem_limit_bytes=vmem_limit,
            ),
        )(x2, gamma2, beta2, wmat, bias2)

    return out2.reshape(*lead, H)


# ----------------------------------------------------------------------------
# Reference + self-test
# ----------------------------------------------------------------------------
def _reference(x, gamma, beta, w, bias):
    xf = x.astype(jnp.float32)
    mean = jnp.mean(xf, axis=-1, keepdims=True)
    var = jnp.mean((xf - mean) ** 2, axis=-1, keepdims=True)
    xn = (xf - mean) * jax.lax.rsqrt(var + EPS)
    y = xn * gamma.astype(jnp.float32) + beta.astype(jnp.float32)
    return (y @ w.astype(jnp.float32) + bias.astype(jnp.float32)).astype(x.dtype)


if __name__ == "__main__":
    key = jax.random.PRNGKey(0)

    # --- Small f32 case (module demo-scale shapes; resident-W path) ----------
    B, S, D, H = 2, 8, 32, 32
    k_x, k_w, k_b = jax.random.split(key, 3)
    x = jax.random.normal(k_x, (B, S, D), dtype=jnp.float32)
    gamma = jnp.ones((D,), dtype=jnp.float32)   # nn.LayerNorm default init
    beta = jnp.zeros((D,), dtype=jnp.float32)
    w = jax.random.normal(k_w, (D, H), dtype=jnp.float32) * (1.0 / jnp.sqrt(D))
    bias = jax.random.normal(k_b, (H,), dtype=jnp.float32) * 0.02

    out = prenorm_linear(x, gamma, beta, w, bias)
    jax.block_until_ready(out)
    ref = _reference(x, gamma, beta, w, bias)
    assert out.shape == (B, S, H)
    assert jnp.allclose(out, ref, atol=1e-4, rtol=1e-4), "f32 mismatch"

    # --- bf16 case forcing the streamed-W multi-tile grid + cached-y path ----
    B2, S2, D2, H2 = 4, 64, 128, 256
    k_x2, k_w2, k_b2 = jax.random.split(jax.random.PRNGKey(1), 3)
    x2 = jax.random.normal(k_x2, (B2, S2, D2), dtype=jnp.float32).astype(jnp.bfloat16)
    g2 = jnp.ones((D2,), dtype=jnp.bfloat16)
    bta2 = jnp.zeros((D2,), dtype=jnp.bfloat16)
    w2 = (jax.random.normal(k_w2, (D2, H2), dtype=jnp.float32)
          * (1.0 / jnp.sqrt(D2))).astype(jnp.bfloat16)
    bias2 = (jax.random.normal(k_b2, (H2,), dtype=jnp.float32) * 0.02).astype(jnp.bfloat16)

    out2 = prenorm_linear(x2, g2, bta2, w2, bias2, tile_n=128, tile_h=128)
    jax.block_until_ready(out2)
    ref2 = _reference(x2, g2, bta2, w2, bias2)
    assert out2.shape == (B2, S2, H2)
    assert jnp.allclose(out2.astype(jnp.float32), ref2.astype(jnp.float32),
                        atol=1e-1, rtol=1e-1), "bf16 mismatch"

    # --- f32 inputs with the opt-in bf16 MXU fast path (auto tiles) ----------
    x3 = jax.random.normal(k_x2, (B2, S2, D2), dtype=jnp.float32)
    w3 = jax.random.normal(k_w2, (D2, H2), dtype=jnp.float32) * (1.0 / jnp.sqrt(D2))
    g3 = jnp.ones((D2,), dtype=jnp.float32)
    bta3 = jnp.zeros((D2,), dtype=jnp.float32)
    bias3 = jax.random.normal(k_b2, (H2,), dtype=jnp.float32) * 0.02

    out3 = prenorm_linear(x3, g3, bta3, w3, bias3, compute_dtype=jnp.bfloat16)
    jax.block_until_ready(out3)
    ref3 = _reference(x3, g3, bta3, w3, bias3)
    assert out3.shape == (B2, S2, H2)
    assert jnp.allclose(out3, ref3, atol=1e-1, rtol=1e-1), "bf16 fast-path mismatch"

    print("KERNEL_OK")
</pallas_src>

<mosaic_0001>
module attributes {stable_mosaic.version = 11 : i64} {
  func.func @_prenorm_resident_kernel(%arg0: i32, %arg1: memref<16x32xf32, #tpu.memory_space<vmem>>, %arg2: memref<1x32xf32, #tpu.memory_space<vmem>>, %arg3: memref<1x32xf32, #tpu.memory_space<vmem>>, %arg4: memref<32x32xf32, #tpu.memory_space<vmem>>, %arg5: memref<1x32xf32, #tpu.memory_space<vmem>>, %arg6: memref<16x32xf32, #tpu.memory_space<vmem>>) attributes {dimension_semantics = [#tpu.dimension_semantics<parallel>], iteration_bounds = array<i64: 1>, scalar_prefetch = 0 : i64, scratch_operands = 0 : i64, tpu.core_type = #tpu.core_type<tc>, window_params = [{transform_indices = @transform_0, window_bounds = array<i64: 16, 32>}, {pipeline_mode = #tpu.pipeline_mode<synchronous>, transform_indices = @transform_1, window_bounds = array<i64: 1, 32>}, {pipeline_mode = #tpu.pipeline_mode<synchronous>, transform_indices = @transform_2, window_bounds = array<i64: 1, 32>}, {pipeline_mode = #tpu.pipeline_mode<synchronous>, transform_indices = @transform_3, window_bounds = array<i64: 32, 32>}, {pipeline_mode = #tpu.pipeline_mode<synchronous>, transform_indices = @transform_4, window_bounds = array<i64: 1, 32>}, {transform_indices = @transform_5, window_bounds = array<i64: 16, 32>}]} {
    %c0 = arith.constant 0 : index
    %c0_0 = arith.constant 0 : index
    %0 = vector.load %arg1[%c0, %c0_0] : memref<16x32xf32, #tpu.memory_space<vmem>>, vector<16x32xf32>
    %cst = arith.constant dense<0.000000e+00> : vector<16xf32>
    %1 = vector.multi_reduction <add>, %0, %cst [1] : vector<16x32xf32> to vector<16xf32>
    %2 = vector.shape_cast %1 : vector<16xf32> to vector<16x1xf32>
    %cst_1 = arith.constant 3.200000e+01 : f32
    %3 = vector.broadcast %cst_1 : f32 to vector<16x1xf32>
    %4 = arith.divf %2, %3 : vector<16x1xf32>
    %5 = vector.broadcast %4 : vector<16x1xf32> to vector<16x32xf32>
    %6 = arith.subf %0, %5 : vector<16x32xf32>
    %7 = arith.mulf %6, %6 : vector<16x32xf32>
    %cst_2 = arith.constant dense<0.000000e+00> : vector<16xf32>
    %8 = vector.multi_reduction <add>, %7, %cst_2 [1] : vector<16x32xf32> to vector<16xf32>
    %9 = vector.shape_cast %8 : vector<16xf32> to vector<16x1xf32>
    %cst_3 = arith.constant 3.200000e+01 : f32
    %10 = vector.broadcast %cst_3 : f32 to vector<16x1xf32>
    %11 = arith.divf %9, %10 : vector<16x1xf32>
    %cst_4 = arith.constant 9.99999974E-6 : f32
    %12 = vector.broadcast %cst_4 : f32 to vector<16x1xf32>
    %13 = arith.addf %11, %12 : vector<16x1xf32>
    %14 = math.rsqrt %13 : vector<16x1xf32>
    %15 = vector.broadcast %14 : vector<16x1xf32> to vector<16x32xf32>
    %16 = arith.mulf %6, %15 : vector<16x32xf32>
    %c0_5 = arith.constant 0 : index
    %c0_6 = arith.constant 0 : index
    %17 = vector.load %arg2[%c0_5, %c0_6] : memref<1x32xf32, #tpu.memory_space<vmem>>, vector<1x32xf32>
    %18 = vector.broadcast %17 : vector<1x32xf32> to vector<16x32xf32>
    %19 = arith.mulf %16, %18 : vector<16x32xf32>
    %c0_7 = arith.constant 0 : index
    %c0_8 = arith.constant 0 : index
    %20 = vector.load %arg3[%c0_7, %c0_8] : memref<1x32xf32, #tpu.memory_space<vmem>>, vector<1x32xf32>
    %21 = vector.broadcast %20 : vector<1x32xf32> to vector<16x32xf32>
    %22 = arith.addf %19, %21 : vector<16x32xf32>
    %c0_9 = arith.constant 0 : index
    %c0_10 = arith.constant 0 : index
    %23 = vector.load %arg4[%c0_9, %c0_10] : memref<32x32xf32, #tpu.memory_space<vmem>>, vector<32x32xf32>
    %cst_11 = arith.constant dense<0.000000e+00> : vector<16x32xf32>
    %24 = tpu.matmul %22, %23, %cst_11 {dimension_numbers = #tpu.dot_dimension_numbers<[1], [0], [0], [1], [0, 0, 1, 1], [], []>} : vector<16x32xf32>, vector<32x32xf32>, vector<16x32xf32> -> vector<16x32xf32>
    %c0_12 = arith.constant 0 : index
    %c0_13 = arith.constant 0 : index
    %25 = vector.load %arg5[%c0_12, %c0_13] : memref<1x32xf32, #tpu.memory_space<vmem>>, vector<1x32xf32>
    %26 = vector.broadcast %25 : vector<1x32xf32> to vector<16x32xf32>
    %27 = arith.addf %24, %26 : vector<16x32xf32>
    %c0_14 = arith.constant 0 : index
    %c0_15 = arith.constant 0 : index
    %28 = vector.load %arg6[%c0_14, %c0_15] : memref<16x32xf32, #tpu.memory_space<vmem>>, vector<16x32xf32>
    tpu.vector_store %arg6[%c0_14, %c0_15], %27 {strides = array<i32>} : memref<16x32xf32, #tpu.memory_space<vmem>>, vector<16x32xf32>,
    return
  }
  func.func @transform_0(%arg0: i32) -> (i32, i32) {
    %c0_i32 = arith.constant 0 : i32
    %c0_i32_0 = arith.constant 0 : i32
    return %arg0, %c0_i32 : i32, i32
  }
  func.func @transform_1(%arg0: i32) -> (i32, i32) {
    %c0_i32 = arith.constant 0 : i32
    %c0_i32_0 = arith.constant 0 : i32
    %c0_i32_1 = arith.constant 0 : i32
    return %c0_i32, %c0_i32_0 : i32, i32
  }
  func.func @transform_2(%arg0: i32) -> (i32, i32) {
    %c0_i32 = arith.constant 0 : i32
    %c0_i32_0 = arith.constant 0 : i32
    %c0_i32_1 = arith.constant 0 : i32
    return %c0_i32, %c0_i32_0 : i32, i32
  }
  func.func @transform_3(%arg0: i32) -> (i32, i32) {
    %c0_i32 = arith.constant 0 : i32
    %c0_i32_0 = arith.constant 0 : i32
    %c0_i32_1 = arith.constant 0 : i32
    return %c0_i32, %c0_i32_0 : i32, i32
  }
  func.func @transform_4(%arg0: i32) -> (i32, i32) {
    %c0_i32 = arith.constant 0 : i32
    %c0_i32_0 = arith.constant 0 : i32
    %c0_i32_1 = arith.constant 0 : i32
    return %c0_i32, %c0_i32_0 : i32, i32
  }
  func.func @transform_5(%arg0: i32) -> (i32, i32) {
    %c0_i32 = arith.constant 0 : i32
    %c0_i32_0 = arith.constant 0 : i32
    return %arg0, %c0_i32 : i32, i32
  }
}

</mosaic_0001>

<llo_original>
// kernel: prenorm_linear.1
$region0: #{prenorm_linear.1}
  #allocation0 [shape = 'u32[]', space=smem, size = 0x4, offset = 0x4, fixed_abs, tag = 'smem constant byte address 0x4 - core index']
  #allocation1 [shape = 'u32[72,128]{1,0:T(1,128)}', space=vmem, size = 0x9000, scoped, tag = 'internal scratch']
  %s0 = inlined_call_operand.hbm [shape: f32[16,32], index: 0, kind: input, shape index: {}]
  %s1 = inlined_call_operand.vmem [shape: f32[1,32], index: 1, kind: input, shape index: {}]
  %s2 = inlined_call_operand.vmem [shape: f32[1,32], index: 2, kind: input, shape index: {}]
  %s3 = inlined_call_operand.hbm [shape: f32[32,32], index: 3, kind: input, shape index: {}]
  %s4 = inlined_call_operand.vmem [shape: f32[1,32], index: 4, kind: input, shape index: {}]
  %s5 = inlined_call_operand.hbm [shape: f32[16,32], index: 5, kind: output, shape index: {}]
  %s6 = sld [smem:[#allocation0]]
  $region38: #{prenorm_linear.1} parent=0
    _
  %s8 = ssub.s32 1, %s6
  %s9 = scalar_select 0, %s8, %s6
  $region1: #{prenorm_linear.1} parent=0
    #allocation2 [shape = 'u8[8192]{0}', space=vmem, size = 0x2000, scoped, tag = 'input window, operand 0, single buffered']
    #allocation3 [shape = 's32[1]{0}', space=sflag, size = 0x4, scoped, tag = 'scoped memory for prenorm_linear.1']
    #allocation4 [shape = 's32[1]{0}', space=sflag, size = 0x4, scoped, tag = 'scoped memory for prenorm_linear.1']
    #allocation5 [shape = 'u8[16384]{0}', space=vmem, size = 0x4000, scoped, tag = 'input window, operand 3, single buffered']
    #allocation6 [shape = 's32[1]{0}', space=sflag, size = 0x4, scoped, tag = 'scoped memory for prenorm_linear.1']
    #allocation7 [shape = 'u8[8192]{0}', space=vmem, size = 0x2000, scoped, tag = 'output window, operand 0, single buffered']
    %10 = vsyncpa [#allocation3], 0
    %11 = vsyncpa [#allocation6], 0
    %12 = vsyncpa [#allocation4], 0
    // Predicated region
    $region2: #{prenorm_linear.1} parent=1 // pred_check
      _
    $region3: #{prenorm_linear.1} parent=1 // pred_check_branch
      %14 = sbr.rel (0) target = $region5
    $region4: #{prenorm_linear.1} parent=1 // pred_region
      %16 = vsyncadd [#allocation3], 0
      %s17 = sshll.u32 %s0, 4
      %s18 = int_to_ptr.hbm [resolvable:$true] %s17
      %s19 = sshll.u32 [#allocation2], 4
      %s20 = int_to_ptr.vmem [resolvable:$true] %s19
      %25 = dma.hbm_to_vmem [thread:$0]  %s18, 256, %s20, [#allocation3], 128, 128, 8
    $region5: #{prenorm_linear.1} parent=1 // pred_fallthru
      _
    // Predicated region
    $region6: #{prenorm_linear.1} parent=1 // pred_check
      _
    $region7: #{prenorm_linear.1} parent=1 // pred_check_branch
      %27 = sbr.rel (0) target = $region9
    $region8: #{prenorm_linear.1} parent=1 // pred_region
      _
    $region9: #{prenorm_linear.1} parent=1 // pred_fallthru
      _
    // Predicated region
    $region10: #{prenorm_linear.1} parent=1 // pred_check
      _
    $region11: #{prenorm_linear.1} parent=1 // pred_check_branch
      %29 = sbr.rel (0) target = $region13
    $region12: #{prenorm_linear.1} parent=1 // pred_region
      _
    $region13: #{prenorm_linear.1} parent=1 // pred_fallthru
      _
    // Predicated region
    $region14: #{prenorm_linear.1} parent=1 // pred_check
      _
    $region15: #{prenorm_linear.1} parent=1 // pred_check_branch
      %31 = sbr.rel (0) target = $region17
    $region16: #{prenorm_linear.1} parent=1 // pred_region
      %33 = vsyncadd [#allocation6], 0
      %s34 = sshll.u32 %s3, 4
      %s35 = int_to_ptr.hbm [resolvable:$true] %s34
      %s36 = sshll.u32 [#allocation5], 4
      %s37 = int_to_ptr.vmem [resolvable:$true] %s36
      %42 = dma.hbm_to_vmem [thread:$0]  %s35, 512, %s37, [#allocation6], 128, 128, 8
    $region17: #{prenorm_linear.1} parent=1 // pred_fallthru
      _
    // Predicated region
    $region18: #{prenorm_linear.1} parent=1 // pred_check
      _
    $region19: #{prenorm_linear.1} parent=1 // pred_check_branch
      %44 = sbr.rel (0) target = $region21
    $region20: #{prenorm_linear.1} parent=1 // pred_region
      _
    $region21: #{prenorm_linear.1} parent=1 // pred_fallthru
      _
    // Predicated region
    $region22: #{prenorm_linear.1} parent=1 // pred_check
      _
    $region23: #{prenorm_linear.1} parent=1 // pred_check_branch
      %46 = sbr.rel (0) target = $region25
    $region24: #{prenorm_linear.1} parent=1 // pred_region
      %48 = dma.done [#allocation3], 256
    $region25: #{prenorm_linear.1} parent=1 // pred_fallthru
      _
    // Predicated region
    $region26: #{prenorm_linear.1} parent=1 // pred_check
      _
    $region27: #{prenorm_linear.1} parent=1 // pred_check_branch
      %50 = sbr.rel (0) target = $region29
    $region28: #{prenorm_linear.1} parent=1 // pred_region
      %52 = dma.done [#allocation6], 512
    $region29: #{prenorm_linear.1} parent=1 // pred_fallthru
      _
    %v53 = vld [vmem:[#allocation2] sm:$0xff]
    %v54 = vld [vmem:[#allocation2 + $0x8] sm:$0xff]
    %vm55 = vcmask 261120
    %v56 = vsel %vm55, %v53, 0.0
    %57 = vadd.xlane.f32.xlu0 %v56
    %v58 = vpop.xlane.xlu0 %57
    %v59 = vsel %vm55, %v54, 0.0
    %60 = vadd.xlane.f32.xlu0 %v59
    %v61 = vpop.xlane.xlu0 %60
    %v62 = vrcp.pop 32.0
    %v63 = vmul.f32 32.0, %v62
    %v64 = vsub.f32 1.0, %v63
    %v65 = vmul.f32 %v62, %v64
    %v66 = vadd.f32 %v62, %v65
    %vm67 = vweird.f32 %v62
    %v68 = vsel %vm67, %v62, %v66
    %v69 = vmul.f32 %v58, %v68
    %v70 = vmul.f32 %v61, %v68
    %v71 = vsub.f32 %v53, %v69
    %v72 = vsub.f32 %v54, %v70
    %v73 = vmul.f32 %v71, %v71
    %v74 = vmul.f32 %v72, %v72
    %v75 = vsel %vm55, %v73, 0.0
    %76 = vadd.xlane.f32.xlu0 %v75
    %v77 = vpop.xlane.xlu0 %76
    %v78 = vsel %vm55, %v74, 0.0
    %79 = vadd.xlane.f32.xlu0 %v78
    %v80 = vpop.xlane.xlu0 %79
    %v81 = vmul.f32 %v77, %v68
    %v82 = vmul.f32 %v80, %v68
    %v83 = vadd.f32 %v81, 1e-05
    %v84 = vadd.f32 %v82, 1e-05
    %v85 = vrsqrt.pop %v83
    %v86 = vmul.f32 %v85, %v83
    %v87 = vmul.f32 %v86, %v85
    %v88 = vmul.f32 0.5, %v87
    %v89 = vsub.f32 1.5, %v88
    %v90 = vmul.f32 %v85, %v89
    %vm91 = vweird.f32 %v83
    %vm92 = vweird.f32 %v85
    %vm93 = vmor %vm91, %vm92
    %v94 = vsel %vm93, %v85, %v90
    %v95 = vrsqrt.pop %v84
    %v96 = vmul.f32 %v95, %v84
    %v97 = vmul.f32 %v96, %v95
    %v98 = vmul.f32 0.5, %v97
    %v99 = vsub.f32 1.5, %v98
    %v100 = vmul.f32 %v95, %v99
    %vm101 = vweird.f32 %v84
    %vm102 = vweird.f32 %v95
    %vm103 = vmor %vm101, %vm102
    %v104 = vsel %vm103, %v95, %v100
    %v105 = vmul.f32 %v71, %v94
    %v106 = vmul.f32 %v72, %v104
    %v107 = vld [vmem:[%s1] sm:$0x1]
    %v109 = vperm.slane %v107, 0
    %v111 = vmul.f32 %v105, %v109
    %v112 = vmul.f32 %v106, %v109
    %v113 = vld [vmem:[%s2] sm:$0x1]
    %v115 = vperm.slane %v113, 0
    %v117 = vadd.f32 %v111, %v115
    %v118 = vadd.f32 %v112, %v115
    %v119 = vld [vmem:[#allocation5] sm:$0xff]
    %v120 = vld [vmem:[#allocation5 + $0x8] sm:$0xff]
    %v121 = vld [vmem:[#allocation5 + $0x10] sm:$0xff]
    %v122 = vld [vmem:[#allocation5 + $0x18] sm:$0xff]
    %v123 = vld [vmem:[%s4] sm:$0x1]
    %v125 = vperm.slane %v123, 0
    %v128 = vsel %vm55, %v117, 0
    %v131 = vsel %vm55, %v118, 0
    %133 = vmatpush.msra.mxu0 0.0
    %134 = vmatpush.msra.mxu0 0.0
    %135 = vmatpush.msra.mxu0 0.0
    %136 = vmatpush.msra.mxu0 0.0
    %137 = vmatpush.msra.mxu0 0.0
    %138 = vmatpush.msra.mxu0 0.0
    %139 = vmatpush.msra.mxu0 0.0
    %140 = vmatpush.msra.mxu0 0.0
    %141 = vmatpush.msra.mxu0 0.0
    %142 = vmatpush.msra.mxu0 0.0
    %143 = vmatpush.msra.mxu0 0.0
    %144 = vmatpush.msra.mxu0 0.0
    %145 = vmatpush.msra.mxu0 %v122
    %146 = vmatpush.msra.mxu0 %v121
    %147 = vmatpush.msra.mxu0 %v120
    %148 = vmatpush.msra.mxu0 %v119
    %149 = vmatmul.f32.gmra.mxu0 %v128
    %v150 = vpop.f32.mrf.mxu0
    %v151 = vadd.f32 %v125, %v150
    %152 = vmatmul.f32.gmra.mxu0 %v131
    %v153 = vpop.f32.mrf.mxu0
    %v154 = vadd.f32 %v125, %v153
    %155 = vdwg.mxu0
    %156 = vst.msk [vmem:[#allocation7] sm:$0xff] %vm55, %v151
    %157 = vst.msk [vmem:[#allocation7 + $0x8] sm:$0xff] %vm55, %v154
    // Predicated region
    $region30: #{prenorm_linear.1} parent=1 // pred_check
      _
    $region31: #{prenorm_linear.1} parent=1 // pred_check_branch
      %159 = sbr.rel (0) target = $region33
    $region32: #{prenorm_linear.1} parent=1 // pred_region
      %161 = vsyncadd [#allocation4], 0
      %s162 = sshll.u32 [#allocation7], 4
      %s163 = int_to_ptr.vmem [resolvable:$true] %s162
      %s164 = sshll.u32 %s5, 4
      %s165 = int_to_ptr.hbm [resolvable:$true] %s164
      %170 = dma.vmem_to_hbm [thread:$0]  %s163, 256, %s165, [#allocation4], 128, 128, 8
    $region33: #{prenorm_linear.1} parent=1 // pred_fallthru
      _
    // Predicated region
    $region34: #{prenorm_linear.1} parent=1 // pred_check
      _
    $region35: #{prenorm_linear.1} parent=1 // pred_check_branch
      %172 = sbr.rel (0) target = $region37
    $region36: #{prenorm_linear.1} parent=1 // pred_region
      %174 = dma.done [#allocation4], 256
    $region37: #{prenorm_linear.1} parent=1 // pred_fallthru
      _
    %175 = vsyncpa [#allocation3], 1
    %176 = vsyncpa [#allocation6], 1
    %177 = vsyncpa [#allocation4], 1

</llo_original>
